<compile_context>
chip_gen: v6e
topology: v6e:2x2x1
jax: 0.10.0
libtpu: 0.0.40
codegen_flags: <defaults>
</compile_context>

<pallas_src>
import jax
import jax.numpy as jnp
import numpy as np
from jax.experimental import pallas as pl
from jax.experimental.pallas import tpu as pltpu


def _round_up(x, m):
    return (x + m - 1) // m * m


# -------- Pallas kernel: fused upsample + reflect-pad + 3x3 conv + BN partial stats -----

def upconv_conv_fused(xs_flat, w_big, mask, *, W, C_in, C_out, Lpad):
    """xs_flat: [N, C_in, Lp]      edge-padded source, flattened, zero-padded to Lp.
       w_big:   [4*C_out, 9*C_in]  parity-folded effective tap weights (see wrapper).
       mask:    [1, Lpad]          1.0 on valid output lanes, 0.0 on junk lanes.
    Returns:
       conv  [N, 4*C_out, Lpad]    parity-major conv output (lane-dense, unmasked stores)
       psum  [N, 4*C_out, 1]       per-batch per-(parity,channel) masked sums
       pssq  [N, 4*C_out, 1]       per-batch per-(parity,channel) masked sums of squares
    """
    N, _, Lp = xs_flat.shape
    Wp = W + 2

    def kernel(xs_ref, w_ref, m_ref, conv_ref, sum_ref, ssq_ref, xstg_ref):
        # Stage the 9 distinct shifted slices once (d = dy*3 + dx), then one big dot.
        for dy in range(3):
            for dx in range(3):
                d = dy * 3 + dx
                off = dy * Wp + dx                       # static lane offset
                xstg_ref[d * C_in:(d + 1) * C_in, :] = xs_ref[0, :, off:off + Lpad]
        acc = jnp.dot(w_ref[...], xstg_ref[...],          # [4*C_out, 9*C_in] x [9*C_in, Lpad]
                      preferred_element_type=jnp.float32)
        conv_ref[0] = acc                                  # full-width unmasked vst
        am = acc * m_ref[...]                              # zero out junk lanes for stats
        sum_ref[0] = jnp.sum(am, axis=-1, keepdims=True)
        ssq_ref[0] = jnp.sum(am * acc, axis=-1, keepdims=True)

    return pl.pallas_call(
        kernel,
        out_shape=(jax.ShapeDtypeStruct((N, 4 * C_out, Lpad), jnp.float32),
                   jax.ShapeDtypeStruct((N, 4 * C_out, 1), jnp.float32),
                   jax.ShapeDtypeStruct((N, 4 * C_out, 1), jnp.float32)),
        grid=(N,),
        in_specs=[pl.BlockSpec((1, C_in, Lp), lambda n: (n, 0, 0)),
                  pl.BlockSpec((4 * C_out, 9 * C_in), lambda n: (0, 0)),
                  pl.BlockSpec((1, Lpad), lambda n: (0, 0))],
        out_specs=(pl.BlockSpec((1, 4 * C_out, Lpad), lambda n: (n, 0, 0)),
                   pl.BlockSpec((1, 4 * C_out, 1), lambda n: (n, 0, 0)),
                   pl.BlockSpec((1, 4 * C_out, 1), lambda n: (n, 0, 0))),
        scratch_shapes=[pltpu.VMEM((9 * C_in, Lpad), jnp.float32)],
        compiler_params=pltpu.CompilerParams(
            dimension_semantics=("parallel",),
            vmem_limit_bytes=32 * 1024 * 1024),
    )(xs_flat, w_big, mask)


# ---------------- UpConvBlock forward ----------------

def upconv_block_forward(x, conv_w, gamma, beta, eps=1e-5):
    """x: [N, C_in, H, W] float32 (NCHW).  Returns [N, C_out, 2H, 2W] float32."""
    N, C_in, H, W = x.shape
    C_out = conv_w.shape[0]
    Wp = W + 2
    L = H * Wp
    Lpad = _round_up(L, 128)          # lane-dense output (288 -> 384 for 16x16)

    # A 3x3 conv on the 2x nearest-upsampled, reflect-padded image collapses, per
    # output parity (r%2, c%2), to a 2x2 conv over the edge-clamped source.
    # R[p, a, y] folds the 3 original taps along an axis into 2 effective taps.
    R = jnp.array([[[1., 0., 0.], [0., 1., 1.]],
                   [[1., 1., 0.], [0., 0., 1.]]], dtype=jnp.float32)
    weff = jnp.einsum('pay,qbx,oiyx->pqaboi', R, R, conv_w.astype(jnp.float32))
    # Scatter the per-parity 2x2 taps into one [4*C_out, 9*C_in] tile over the 9
    # distinct source shifts d = dy*3 + dx (zeros where a parity skips a shift).
    wb = jnp.zeros((4, C_out, 9, C_in), jnp.float32)
    for pr in range(2):
        for pc in range(2):
            p = pr * 2 + pc
            for a in range(2):
                for b in range(2):
                    d = (pr + a) * 3 + (pc + b)
                    wb = wb.at[p, :, d, :].set(weff[pr, pc, a, b])
    w_big = wb.reshape(4 * C_out, 9 * C_in)

    # Reflect-pad of the x2-upsampled image == edge-clamp of the source, so a
    # 1-pixel edge pad of the *source* is all the halo needed.  Flatten spatially
    # and zero-pad the flat axis so all 9 shifted length-Lpad slices stay in-bounds.
    xs = jnp.pad(x.astype(jnp.float32), ((0, 0), (0, 0), (1, 1), (1, 1)), mode='edge')
    xs_flat = xs.reshape(N, C_in, (H + 2) * Wp)
    Lp = _round_up(2 * Wp + 2 + Lpad, 128)
    xs_flat = jnp.pad(xs_flat, ((0, 0), (0, 0), (0, Lp - (H + 2) * Wp)))

    lane = jnp.arange(Lpad, dtype=jnp.int32)
    mask = ((lane < L) & (lane % Wp < W)).astype(jnp.float32).reshape(1, Lpad)

    # Pallas kernel: fused upsample + pad + conv (+ BN partial statistics).
    conv_flat, psum, pssq = upconv_conv_fused(
        xs_flat, w_big, mask, W=W, C_in=C_in, C_out=C_out, Lpad=Lpad)

    # Finalize BatchNorm2d training-mode batch statistics (tiny XLA op).
    cnt = jnp.float32(N * 4 * H * W)                          # == N * (2H) * (2W)
    mean = jnp.sum(psum[:, :, 0].reshape(N, 4, C_out), axis=(0, 1)) / cnt
    ex2 = jnp.sum(pssq[:, :, 0].reshape(N, 4, C_out), axis=(0, 1)) / cnt
    # TODO(synk): E[x^2]-mean^2 can cancel when |mean| >> std; switch to a
    #             two-pass centered variance if real activations demand it.
    var = jnp.maximum(ex2 - mean * mean, 0.0)
    scale = gamma.astype(jnp.float32) / jnp.sqrt(var + eps)   # [C_out]
    shift = beta.astype(jnp.float32) - mean * scale

    # BN affine + LeakyReLU(0.2) + parity interleave: one fused XLA transpose pass.
    act = conv_flat[:, :, :L].reshape(N, 2, 2, C_out, H, Wp)[..., :W]
    y = act * scale.reshape(1, 1, 1, C_out, 1, 1) + shift.reshape(1, 1, 1, C_out, 1, 1)
    y = jnp.where(y > 0, y, 0.2 * y)
    return y.transpose(0, 3, 4, 1, 5, 2).reshape(N, C_out, 2 * H, 2 * W)


# ---------------- pure-JAX reference for verification ----------------

def reference_forward(x, conv_w, gamma, beta, eps=1e-5):
    up = jnp.repeat(jnp.repeat(x, 2, axis=2), 2, axis=3)
    up_p = jnp.pad(up, ((0, 0), (0, 0), (1, 1), (1, 1)), mode="reflect")
    conv = jax.lax.conv_general_dilated(
        up_p, conv_w, window_strides=(1, 1), padding="VALID",
        dimension_numbers=("NCHW", "OIHW", "NCHW"))
    mean = jnp.mean(conv, axis=(0, 2, 3), keepdims=True)
    var = jnp.var(conv, axis=(0, 2, 3), keepdims=True)
    y = (conv - mean) / jnp.sqrt(var + eps) * gamma.reshape(1, -1, 1, 1) \
        + beta.reshape(1, -1, 1, 1)
    return jnp.where(y > 0, y, 0.2 * y)


if __name__ == "__main__":
    # small shapes consistent with UpConvBlock(in_ch=4, out_ch=8)
    N, C_in, H, W = 2, 4, 16, 16
    C_out = 8

    key = jax.random.PRNGKey(0)
    kx, kw, kg, kb = jax.random.split(key, 4)

    x = jax.random.normal(kx, (N, C_in, H, W), dtype=jnp.float32)
    fan_in = C_in * 9
    conv_w = jax.random.normal(kw, (C_out, C_in, 3, 3), dtype=jnp.float32) / np.sqrt(fan_in)
    gamma = 1.0 + 0.1 * jax.random.normal(kg, (C_out,), dtype=jnp.float32)
    beta = 0.05 * jax.random.normal(kb, (C_out,), dtype=jnp.float32)

    out = jax.block_until_ready(jax.jit(upconv_block_forward)(x, conv_w, gamma, beta))
    ref = jax.block_until_ready(reference_forward(x, conv_w, gamma, beta))

    assert out.shape == (N, C_out, 2 * H, 2 * W), out.shape
    np.testing.assert_allclose(np.asarray(out), np.asarray(ref), rtol=1e-4, atol=1e-4)

    print("KERNEL_OK")
</pallas_src>

<mosaic_0001>
module attributes {stable_mosaic.version = 11 : i64} {
  func.func @kernel(%arg0: i32, %arg1: memref<1x4x512xf32, #tpu.memory_space<vmem>>, %arg2: memref<32x36xf32, #tpu.memory_space<vmem>>, %arg3: memref<1x384xf32, #tpu.memory_space<vmem>>, %arg4: memref<1x32x384xf32, #tpu.memory_space<vmem>>, %arg5: memref<1x32x1xf32, #tpu.memory_space<vmem>>, %arg6: memref<1x32x1xf32, #tpu.memory_space<vmem>>, %arg7: memref<36x384xf32, #tpu.memory_space<vmem>>) attributes {dimension_semantics = [#tpu.dimension_semantics<parallel>], iteration_bounds = array<i64: 2>, scalar_prefetch = 0 : i64, scratch_operands = 1 : i64, tpu.core_type = #tpu.core_type<tc>, window_params = [{transform_indices = @transform_0, window_bounds = array<i64: 1, 4, 512>}, {pipeline_mode = #tpu.pipeline_mode<synchronous>, transform_indices = @transform_1, window_bounds = array<i64: 32, 36>}, {pipeline_mode = #tpu.pipeline_mode<synchronous>, transform_indices = @transform_2, window_bounds = array<i64: 1, 384>}, {transform_indices = @transform_3, window_bounds = array<i64: 1, 32, 384>}, {transform_indices = @transform_4, window_bounds = array<i64: 1, 32, 1>}, {transform_indices = @transform_5, window_bounds = array<i64: 1, 32, 1>}]} {
    %c0 = arith.constant 0 : index
    %c0_0 = arith.constant 0 : index
    %c0_1 = arith.constant 0 : index
    %0 = vector.load %arg1[%c0, %c0_0, %c0_1] : memref<1x4x512xf32, #tpu.memory_space<vmem>>, vector<1x4x384xf32>
    %1 = vector.shape_cast %0 : vector<1x4x384xf32> to vector<4x384xf32>
    %c0_2 = arith.constant 0 : index
    %c0_3 = arith.constant 0 : index
    %2 = vector.load %arg7[%c0_2, %c0_3] : memref<36x384xf32, #tpu.memory_space<vmem>>, vector<4x384xf32>
    tpu.vector_store %arg7[%c0_2, %c0_3], %1 {strides = array<i32>} : memref<36x384xf32, #tpu.memory_space<vmem>>, vector<4x384xf32>,
    %c0_4 = arith.constant 0 : index
    %c0_5 = arith.constant 0 : index
    %c1 = arith.constant 1 : index
    %3 = vector.load %arg1[%c0_4, %c0_5, %c1] : memref<1x4x512xf32, #tpu.memory_space<vmem>>, vector<1x4x384xf32>
    %4 = vector.shape_cast %3 : vector<1x4x384xf32> to vector<4x384xf32>
    %c4 = arith.constant 4 : index
    %c0_6 = arith.constant 0 : index
    %5 = vector.load %arg7[%c4, %c0_6] : memref<36x384xf32, #tpu.memory_space<vmem>>, vector<4x384xf32>
    tpu.vector_store %arg7[%c4, %c0_6], %4 {strides = array<i32>} : memref<36x384xf32, #tpu.memory_space<vmem>>, vector<4x384xf32>,
    %c0_7 = arith.constant 0 : index
    %c0_8 = arith.constant 0 : index
    %c2 = arith.constant 2 : index
    %6 = vector.load %arg1[%c0_7, %c0_8, %c2] : memref<1x4x512xf32, #tpu.memory_space<vmem>>, vector<1x4x384xf32>
    %7 = vector.shape_cast %6 : vector<1x4x384xf32> to vector<4x384xf32>
    %c8 = arith.constant 8 : index
    %c0_9 = arith.constant 0 : index
    %8 = vector.load %arg7[%c8, %c0_9] : memref<36x384xf32, #tpu.memory_space<vmem>>, vector<4x384xf32>
    tpu.vector_store %arg7[%c8, %c0_9], %7 {strides = array<i32>} : memref<36x384xf32, #tpu.memory_space<vmem>>, vector<4x384xf32>,
    %c0_10 = arith.constant 0 : index
    %c0_11 = arith.constant 0 : index
    %c18 = arith.constant 18 : index
    %9 = vector.load %arg1[%c0_10, %c0_11, %c18] : memref<1x4x512xf32, #tpu.memory_space<vmem>>, vector<1x4x384xf32>
    %10 = vector.shape_cast %9 : vector<1x4x384xf32> to vector<4x384xf32>
    %c12 = arith.constant 12 : index
    %c0_12 = arith.constant 0 : index
    %11 = vector.load %arg7[%c12, %c0_12] : memref<36x384xf32, #tpu.memory_space<vmem>>, vector<4x384xf32>
    tpu.vector_store %arg7[%c12, %c0_12], %10 {strides = array<i32>} : memref<36x384xf32, #tpu.memory_space<vmem>>, vector<4x384xf32>,
    %c0_13 = arith.constant 0 : index
    %c0_14 = arith.constant 0 : index
    %c19 = arith.constant 19 : index
    %12 = vector.load %arg1[%c0_13, %c0_14, %c19] : memref<1x4x512xf32, #tpu.memory_space<vmem>>, vector<1x4x384xf32>
    %13 = vector.shape_cast %12 : vector<1x4x384xf32> to vector<4x384xf32>
    %c16 = arith.constant 16 : index
    %c0_15 = arith.constant 0 : index
    %14 = vector.load %arg7[%c16, %c0_15] : memref<36x384xf32, #tpu.memory_space<vmem>>, vector<4x384xf32>
    tpu.vector_store %arg7[%c16, %c0_15], %13 {strides = array<i32>} : memref<36x384xf32, #tpu.memory_space<vmem>>, vector<4x384xf32>,
    %c0_16 = arith.constant 0 : index
    %c0_17 = arith.constant 0 : index
    %c20 = arith.constant 20 : index
    %15 = vector.load %arg1[%c0_16, %c0_17, %c20] : memref<1x4x512xf32, #tpu.memory_space<vmem>>, vector<1x4x384xf32>
    %16 = vector.shape_cast %15 : vector<1x4x384xf32> to vector<4x384xf32>
    %c20_18 = arith.constant 20 : index
    %c0_19 = arith.constant 0 : index
    %17 = vector.load %arg7[%c20_18, %c0_19] : memref<36x384xf32, #tpu.memory_space<vmem>>, vector<4x384xf32>
    tpu.vector_store %arg7[%c20_18, %c0_19], %16 {strides = array<i32>} : memref<36x384xf32, #tpu.memory_space<vmem>>, vector<4x384xf32>,
    %c0_20 = arith.constant 0 : index
    %c0_21 = arith.constant 0 : index
    %c36 = arith.constant 36 : index
    %18 = vector.load %arg1[%c0_20, %c0_21, %c36] : memref<1x4x512xf32, #tpu.memory_space<vmem>>, vector<1x4x384xf32>
    %19 = vector.shape_cast %18 : vector<1x4x384xf32> to vector<4x384xf32>
    %c24 = arith.constant 24 : index
    %c0_22 = arith.constant 0 : index
    %20 = vector.load %arg7[%c24, %c0_22] : memref<36x384xf32, #tpu.memory_space<vmem>>, vector<4x384xf32>
    tpu.vector_store %arg7[%c24, %c0_22], %19 {strides = array<i32>} : memref<36x384xf32, #tpu.memory_space<vmem>>, vector<4x384xf32>,
    %c0_23 = arith.constant 0 : index
    %c0_24 = arith.constant 0 : index
    %c37 = arith.constant 37 : index
    %21 = vector.load %arg1[%c0_23, %c0_24, %c37] : memref<1x4x512xf32, #tpu.memory_space<vmem>>, vector<1x4x384xf32>
    %22 = vector.shape_cast %21 : vector<1x4x384xf32> to vector<4x384xf32>
    %c28 = arith.constant 28 : index
    %c0_25 = arith.constant 0 : index
    %23 = vector.load %arg7[%c28, %c0_25] : memref<36x384xf32, #tpu.memory_space<vmem>>, vector<4x384xf32>
    tpu.vector_store %arg7[%c28, %c0_25], %22 {strides = array<i32>} : memref<36x384xf32, #tpu.memory_space<vmem>>, vector<4x384xf32>,
    %c0_26 = arith.constant 0 : index
    %c0_27 = arith.constant 0 : index
    %c38 = arith.constant 38 : index
    %24 = vector.load %arg1[%c0_26, %c0_27, %c38] : memref<1x4x512xf32, #tpu.memory_space<vmem>>, vector<1x4x384xf32>
    %25 = vector.shape_cast %24 : vector<1x4x384xf32> to vector<4x384xf32>
    %c32 = arith.constant 32 : index
    %c0_28 = arith.constant 0 : index
    %26 = vector.load %arg7[%c32, %c0_28] : memref<36x384xf32, #tpu.memory_space<vmem>>, vector<4x384xf32>
    tpu.vector_store %arg7[%c32, %c0_28], %25 {strides = array<i32>} : memref<36x384xf32, #tpu.memory_space<vmem>>, vector<4x384xf32>,
    %c0_29 = arith.constant 0 : index
    %c0_30 = arith.constant 0 : index
    %27 = vector.load %arg2[%c0_29, %c0_30] : memref<32x36xf32, #tpu.memory_space<vmem>>, vector<32x36xf32>
    %c0_31 = arith.constant 0 : index
    %c0_32 = arith.constant 0 : index
    %28 = vector.load %arg7[%c0_31, %c0_32] : memref<36x384xf32, #tpu.memory_space<vmem>>, vector<36x384xf32>
    %cst = arith.constant dense<0.000000e+00> : vector<32x384xf32>
    %29 = tpu.matmul %27, %28, %cst {dimension_numbers = #tpu.dot_dimension_numbers<[1], [0], [0], [1], [0, 0, 1, 1], [], []>} : vector<32x36xf32>, vector<36x384xf32>, vector<32x384xf32> -> vector<32x384xf32>
    %c0_33 = arith.constant 0 : index
    %c0_34 = arith.constant 0 : index
    %c0_35 = arith.constant 0 : index
    %30 = vector.load %arg4[%c0_33, %c0_34, %c0_35] : memref<1x32x384xf32, #tpu.memory_space<vmem>>, vector<1x32x384xf32>
    %31 = vector.shape_cast %30 : vector<1x32x384xf32> to vector<32x384xf32>
    %32 = vector.shape_cast %29 : vector<32x384xf32> to vector<1x32x384xf32>
    tpu.vector_store %arg4[%c0_33, %c0_34, %c0_35], %32 {strides = array<i32>} : memref<1x32x384xf32, #tpu.memory_space<vmem>>, vector<1x32x384xf32>,
    %c0_36 = arith.constant 0 : index
    %c0_37 = arith.constant 0 : index
    %33 = vector.load %arg3[%c0_36, %c0_37] : memref<1x384xf32, #tpu.memory_space<vmem>>, vector<1x384xf32>
    %34 = vector.broadcast %33 : vector<1x384xf32> to vector<32x384xf32>
    %35 = arith.mulf %29, %34 : vector<32x384xf32>
    %cst_38 = arith.constant dense<0.000000e+00> : vector<32xf32>
    %36 = vector.multi_reduction <add>, %35, %cst_38 [1] : vector<32x384xf32> to vector<32xf32>
    %37 = vector.shape_cast %36 : vector<32xf32> to vector<32x1xf32>
    %c0_39 = arith.constant 0 : index
    %c0_40 = arith.constant 0 : index
    %c0_41 = arith.constant 0 : index
    %38 = vector.load %arg5[%c0_39, %c0_40, %c0_41] : memref<1x32x1xf32, #tpu.memory_space<vmem>>, vector<1x32x1xf32>
    %39 = vector.shape_cast %38 : vector<1x32x1xf32> to vector<32x1xf32>
    %40 = vector.shape_cast %37 : vector<32x1xf32> to vector<1x32x1xf32>
    tpu.vector_store %arg5[%c0_39, %c0_40, %c0_41], %40 {strides = array<i32>} : memref<1x32x1xf32, #tpu.memory_space<vmem>>, vector<1x32x1xf32>,
    %41 = arith.mulf %35, %29 : vector<32x384xf32>
    %cst_42 = arith.constant dense<0.000000e+00> : vector<32xf32>
    %42 = vector.multi_reduction <add>, %41, %cst_42 [1] : vector<32x384xf32> to vector<32xf32>
    %43 = vector.shape_cast %42 : vector<32xf32> to vector<32x1xf32>
    %c0_43 = arith.constant 0 : index
    %c0_44 = arith.constant 0 : index
    %c0_45 = arith.constant 0 : index
    %44 = vector.load %arg6[%c0_43, %c0_44, %c0_45] : memref<1x32x1xf32, #tpu.memory_space<vmem>>, vector<1x32x1xf32>
    %45 = vector.shape_cast %44 : vector<1x32x1xf32> to vector<32x1xf32>
    %46 = vector.shape_cast %43 : vector<32x1xf32> to vector<1x32x1xf32>
    tpu.vector_store %arg6[%c0_43, %c0_44, %c0_45], %46 {strides = array<i32>} : memref<1x32x1xf32, #tpu.memory_space<vmem>>, vector<1x32x1xf32>,
    return
  }
  func.func @transform_0(%arg0: i32) -> (i32, i32, i32) {
    %c0_i32 = arith.constant 0 : i32
    %c0_i32_0 = arith.constant 0 : i32
    %c0_i32_1 = arith.constant 0 : i32
    return %arg0, %c0_i32, %c0_i32_0 : i32, i32, i32
  }
  func.func @transform_1(%arg0: i32) -> (i32, i32) {
    %c0_i32 = arith.constant 0 : i32
    %c0_i32_0 = arith.constant 0 : i32
    %c0_i32_1 = arith.constant 0 : i32
    return %c0_i32, %c0_i32_0 : i32, i32
  }
  func.func @transform_2(%arg0: i32) -> (i32, i32) {
    %c0_i32 = arith.constant 0 : i32
    %c0_i32_0 = arith.constant 0 : i32
    %c0_i32_1 = arith.constant 0 : i32
    return %c0_i32, %c0_i32_0 : i32, i32
  }
  func.func @transform_3(%arg0: i32) -> (i32, i32, i32) {
    %c0_i32 = arith.constant 0 : i32
    %c0_i32_0 = arith.constant 0 : i32
    %c0_i32_1 = arith.constant 0 : i32
    return %arg0, %c0_i32, %c0_i32_0 : i32, i32, i32
  }
  func.func @transform_4(%arg0: i32) -> (i32, i32, i32) {
    %c0_i32 = arith.constant 0 : i32
    %c0_i32_0 = arith.constant 0 : i32
    %c0_i32_1 = arith.constant 0 : i32
    return %arg0, %c0_i32, %c0_i32_0 : i32, i32, i32
  }
  func.func @transform_5(%arg0: i32) -> (i32, i32, i32) {
    %c0_i32 = arith.constant 0 : i32
    %c0_i32_0 = arith.constant 0 : i32
    %c0_i32_1 = arith.constant 0 : i32
    return %arg0, %c0_i32, %c0_i32_0 : i32, i32, i32
  }
}

</mosaic_0001>

<llo_original>
// kernel: upconv_block_forward.1
$region0: #{upconv_block_forward.1}
  #allocation0 [shape = 'u32[]', space=smem, size = 0x4, offset = 0x4, fixed_abs, tag = 'smem constant byte address 0x4 - core index']
  #allocation1 [shape = 'u32[144,128]{1,0:T(1,128)}', space=vmem, size = 0x12000, scoped, tag = 'internal scratch']
  #allocation2 [shape = 'f32[36,384]{1,0:T(8,128)}', space=vmem, size = 0xf000, scoped, tag = 'scratch operand']
  %s0 = inlined_call_operand.vmem [shape: f32[2,4,512], index: 0, kind: input, shape index: {}]
  %s1 = inlined_call_operand.vmem [shape: f32[32,36], index: 1, kind: input, shape index: {}]
  %s2 = inlined_call_operand.vmem [shape: f32[1,384], index: 2, kind: input, shape index: {}]
  %s3 = inlined_call_operand.vmem [shape: f32[2,32,384], index: 3, kind: output, shape index: {0}]
  %s4 = inlined_call_operand.vmem [shape: f32[2,32,1], index: 4, kind: output, shape index: {1}]
  %s5 = inlined_call_operand.vmem [shape: f32[2,32,1], index: 5, kind: output, shape index: {2}]
  %6 = xla_tuple %s3, %s4, %s5
  %s7 = sld [smem:[#allocation0]]
  $region61: #{upconv_block_forward.1} parent=0
    _
  %s9 = ssub.s32 1, %s7
  %s10 = scalar_select 0, %s9, %s7
  loop: start=0, step=1, limit=4
  $region2: #{upconv_block_forward.1} parent=0 // loop_pre_header
    _
  $region3: #{upconv_block_forward.1} parent=0 // loop_header
    %s12 = sphi 0, %s16
    %p13 = scmp.ge.s32.totalorder %s12, 4
    %s22 = sphi 0, %s24
    %s25 = sphi 0, %s22
    %s26 = sphi 0, %s25
    %s42 = sphi 0, %s26
    %s46 = sphi 0, %s46
    %s48 = sphi 0, %s46
    %s49 = sphi 0, %s48
    %s63 = sphi 0, %s49
    %s67 = sphi 0, %s67
    %s69 = sphi 0, %s67
    %s70 = sphi 0, %s69
    %s84 = sphi 0, %s70
    %s90 = sphi 0, %s92
    %s93 = sphi 0, %s90
    %s94 = sphi 0, %s93
    %s110 = sphi 0, %s94
    %s116 = sphi 0, %s118
    %s119 = sphi 0, %s116
    %s120 = sphi 0, %s119
    %s136 = sphi 0, %s120
    %s142 = sphi 0, %s144
    %s145 = sphi 0, %s142
    %s146 = sphi 0, %s145
    %s162 = sphi 0, %s146
  $region4: #{upconv_block_forward.1} parent=0 // loop_header_branch
    %15 = sbr.rel (%p13) target = $region8
  $region5: #{upconv_block_forward.1} parent=0 // loop_body
    %s17 = ssub.s32 %s12, 1
    %s18 = ssub.s32 %s12, 2
    %s19 = sadd.s32 %s12, 1
    %s20 = ssub.s32 %s12, %s19
    %p21 = scmp.eq.s32.totalorder %s20, 0
    %s23 = sadd.s32 %s22, 1
    %s24 = scalar_select %p21, %s22, %s23
    %p27 = pneg %p21
    %p28 = scmp.eq.s32.totalorder %s12, 1
    %p29 = por %p27, %p28
    %p30 = scmp.ne.s32.totalorder %s22, %s25
    %p31 = scmp.eq.s32.totalorder %s12, 0
    %p32 = por %p30, %p31
    %p33 = scmp.ne.s32.totalorder %s22, %s25
    %p34 = scmp.eq.s32.totalorder %s17, 1
    %p35 = por %p33, %p34
    %p36 = scmp.ne.s32.totalorder %s25, %s26
    %p37 = scmp.eq.s32.totalorder %s17, 0
    %p38 = por %p36, %p37
    %p39 = scmp.ne.s32.totalorder %s25, %s26
    %p40 = scmp.eq.s32.totalorder %s18, 1
    %p41 = por %p39, %p40
    %p43 = scmp.ne.s32.totalorder %s26, %s42
    %p44 = scmp.eq.s32.totalorder %s18, 0
    %p45 = por %p43, %p44
    %s47 = sadd.s32 %s46, 1
    %p50 = scmp.eq.s32.totalorder %s12, 1
    %p51 = scmp.ne.s32.totalorder %s46, %s48
    %p52 = scmp.eq.s32.totalorder %s12, 0
    %p53 = por %p51, %p52
    %p54 = scmp.ne.s32.totalorder %s46, %s48
    %p55 = scmp.eq.s32.totalorder %s17, 1
    %p56 = por %p54, %p55
    %p57 = scmp.ne.s32.totalorder %s48, %s49
    %p58 = scmp.eq.s32.totalorder %s17, 0
    %p59 = por %p57, %p58
    %p60 = scmp.ne.s32.totalorder %s48, %s49
    %p61 = scmp.eq.s32.totalorder %s18, 1
    %p62 = por %p60, %p61
    %p64 = scmp.ne.s32.totalorder %s49, %s63
    %p65 = scmp.eq.s32.totalorder %s18, 0
    %p66 = por %p64, %p65
    %s68 = sadd.s32 %s67, 1
    %p71 = scmp.eq.s32.totalorder %s12, 1
    %p72 = scmp.ne.s32.totalorder %s67, %s69
    %p73 = scmp.eq.s32.totalorder %s12, 0
    %p74 = por %p72, %p73
    %p75 = scmp.ne.s32.totalorder %s67, %s69
    %p76 = scmp.eq.s32.totalorder %s17, 1
    %p77 = por %p75, %p76
    %p78 = scmp.ne.s32.totalorder %s69, %s70
    %p79 = scmp.eq.s32.totalorder %s17, 0
    %p80 = por %p78, %p79
    %p81 = scmp.ne.s32.totalorder %s69, %s70
    %p82 = scmp.eq.s32.totalorder %s18, 1
    %p83 = por %p81, %p82
    %p85 = scmp.ne.s32.totalorder %s70, %s84
    %p86 = scmp.eq.s32.totalorder %s18, 0
    %p87 = por %p85, %p86
    %s88 = ssub.s32 %s12, %s19
    %p89 = scmp.eq.s32.totalorder %s88, 0
    %s91 = sadd.s32 %s90, 1
    %s92 = scalar_select %p89, %s90, %s91
    %p95 = pneg %p89
    %p96 = scmp.eq.s32.totalorder %s12, 1
    %p97 = por %p95, %p96
    %p98 = scmp.ne.s32.totalorder %s90, %s93
    %p99 = scmp.eq.s32.totalorder %s12, 0
    %p100 = por %p98, %p99
    %p101 = scmp.ne.s32.totalorder %s90, %s93
    %p102 = scmp.eq.s32.totalorder %s17, 1
    %p103 = por %p101, %p102
    %p104 = scmp.ne.s32.totalorder %s93, %s94
    %p105 = scmp.eq.s32.totalorder %s17, 0
    %p106 = por %p104, %p105
    %p107 = scmp.ne.s32.totalorder %s93, %s94
    %p108 = scmp.eq.s32.totalorder %s18, 1
    %p109 = por %p107, %p108
    %p111 = scmp.ne.s32.totalorder %s94, %s110
    %p112 = scmp.eq.s32.totalorder %s18, 0
    %p113 = por %p111, %p112
    %s114 = ssub.s32 %s12, %s19
    %p115 = scmp.eq.s32.totalorder %s114, 0
    %s117 = sadd.s32 %s116, 1
    %s118 = scalar_select %p115, %s116, %s117
    %p121 = pneg %p115
    %p122 = scmp.eq.s32.totalorder %s12, 1
    %p123 = por %p121, %p122
    %p124 = scmp.ne.s32.totalorder %s116, %s119
    %p125 = scmp.eq.s32.totalorder %s12, 0
    %p126 = por %p124, %p125
    %p127 = scmp.ne.s32.totalorder %s116, %s119
    %p128 = scmp.eq.s32.totalorder %s17, 1
    %p129 = por %p127, %p128
    %p130 = scmp.ne.s32.totalorder %s119, %s120
    %p131 = scmp.eq.s32.totalorder %s17, 0
    %p132 = por %p130, %p131
    %p133 = scmp.ne.s32.totalorder %s119, %s120
    %p134 = scmp.eq.s32.totalorder %s18, 1
    %p135 = por %p133, %p134
    %p137 = scmp.ne.s32.totalorder %s120, %s136
    %p138 = scmp.eq.s32.totalorder %s18, 0
    %p139 = por %p137, %p138
    %s140 = ssub.s32 %s12, %s19
    %p141 = scmp.eq.s32.totalorder %s140, 0
    %s143 = sadd.s32 %s142, 1
    %s144 = scalar_select %p141, %s142, %s143
    %p147 = pneg %p141
    %p148 = scmp.eq.s32.totalorder %s12, 1
    %p149 = por %p147, %p148
    %p150 = scmp.ne.s32.totalorder %s142, %s145
    %p151 = scmp.eq.s32.totalorder %s12, 0
    %p152 = por %p150, %p151
    %p153 = scmp.ne.s32.totalorder %s142, %s145
    %p154 = scmp.eq.s32.totalorder %s17, 1
    %p155 = por %p153, %p154
    %p156 = scmp.ne.s32.totalorder %s145, %s146
    %p157 = scmp.eq.s32.totalorder %s17, 0
    %p158 = por %p156, %p157
    %p159 = scmp.ne.s32.totalorder %s145, %s146
    %p160 = scmp.eq.s32.totalorder %s18, 1
    %p161 = por %p159, %p160
    %p163 = scmp.ne.s32.totalorder %s146, %s162
    %p164 = scmp.eq.s32.totalorder %s18, 0
    %p165 = por %p163, %p164
    %p166 = scmp.le.s32.totalorder 1, %s12
    %p167 = scmp.lt.s32.totalorder %s12, 3
    %p168 = pnand %p166, %p167
    %p169 = pneg %p168
    // Predicated region
    $region9: #{upconv_block_forward.1} parent=5 // pred_check
      _
    $region10: #{upconv_block_forward.1} parent=5 // pred_check_branch
      %171 = sbr.rel (%p168) target = $region12
    $region11: #{upconv_block_forward.1} parent=5 // pred_region
      %s172 = ssub.s32 %s12, 1
      // Predicated region
      $region13: #{upconv_block_forward.1} parent=11 // pred_check
        %p173 = pneg %p59
      $region14: #{upconv_block_forward.1} parent=11 // pred_check_branch
        %175 = sbr.rel (%p173) target = $region16
      $region15: #{upconv_block_forward.1} parent=11 // pred_region
        _
      $region16: #{upconv_block_forward.1} parent=11 // pred_fallthru
        _
      // Predicated region
      $region17: #{upconv_block_forward.1} parent=11 // pred_check
        %p176 = pneg %p80
      $region18: #{upconv_block_forward.1} parent=11 // pred_check_branch
        %178 = sbr.rel (%p176) target = $region20
      $region19: #{upconv_block_forward.1} parent=11 // pred_region
        _
      $region20: #{upconv_block_forward.1} parent=11 // pred_fallthru
        _
    $region12: #{upconv_block_forward.1} parent=5 // pred_fallthru
      _
    %p179 = scmp.lt.s32.totalorder %s12, 2
    // Predicated region
    $region21: #{upconv_block_forward.1} parent=5 // pred_check
      %p180 = pneg %p179
    $region22: #{upconv_block_forward.1} parent=5 // pred_check_branch
      %182 = sbr.rel (%p180) target = $region24
    $region23: #{upconv_block_forward.1} parent=5 // pred_region
      // Predicated region
      $region25: #{upconv_block_forward.1} parent=23 // pred_check
        %p183 = pneg %p32
      $region26: #{upconv_block_forward.1} parent=23 // pred_check_branch
        %185 = sbr.rel (%p183) target = $region28
      $region27: #{upconv_block_forward.1} parent=23 // pred_region
        %p186 = scmp.lt.s32.totalorder %s12, 1
        %s187 = scalar_select %p186, %s12, 1
        %s188 = smul.addr %s187, 4
        %s189 = smul.addr %s188, 4
        %s190 = scalar_lea.vmem %s0, %s189
      $region28: #{upconv_block_forward.1} parent=23 // pred_fallthru
        _
    $region24: #{upconv_block_forward.1} parent=5 // pred_fallthru
      _
    %p191 = scmp.le.s32.totalorder 1, %s12
    %p192 = scmp.lt.s32.totalorder %s12, 3
    %p193 = pnand %p191, %p192
    %p194 = pneg %p193
    // Predicated region
    $region29: #{upconv_block_forward.1} parent=5 // pred_check
      _
    $region30: #{upconv_block_forward.1} parent=5 // pred_check_branch
      %196 = sbr.rel (%p193) target = $region32
    $region31: #{upconv_block_forward.1} parent=5 // pred_region
      %s197 = ssub.s32 %s12, 1
      %p198 = scmp.lt.s32.totalorder %s17, 1
      %s199 = scalar_select %p198, %s17, 1
      %s200 = smul.addr %s199, 4
      %s201 = smul.addr %s200, 4
      %s202 = scalar_lea.vmem %s0, %s201
      %p203 = pneg %p38
      %p204 = pneg %p35
      %p205 = pneg %p59
      %p206 = pneg %p56
      %p207 = pneg %p80
      %p208 = pneg %p77
      %p209 = pneg %p106
      %p210 = pneg %p103
      %p211 = scmp.lt.s32.totalorder %s17, 1
      %s212 = scalar_select %p211, %s17, 1
      %s213 = smul.addr %s212, 12
      %s214 = smul.addr %s213, 8
      %s215 = scalar_lea.vmem %s3, %s214
      %p216 = pneg %p132
      %p217 = pneg %p129
      %p218 = scmp.lt.s32.totalorder %s17, 1
      %s219 = scalar_select %p218, %s17, 1
      %s220 = smul.addr %s219, 4
      %s221 = smul.addr %s220, 8
      %s222 = scalar_lea.vmem %s4, %s221
      %p223 = pneg %p158
      %p224 = pneg %p155
      %p225 = scmp.lt.s32.totalorder %s17, 1
      %s226 = scalar_select %p225, %s17, 1
      %s227 = smul.addr %s226, 4
      %s228 = smul.addr %s227, 8
      %s229 = scalar_lea.vmem %s5, %s228
      %p230 = scmp.lt.s32.totalorder %s17, 1
      %s231 = scalar_select %p230, %s17, 1
      %s232 = smul.addr %s231, 4
      %s233 = smul.addr %s232, 4
      %s234 = scalar_lea.vmem %s0, %s233
      %p235 = scmp.lt.s32.totalorder %s17, 1
      %s236 = scalar_select %p235, %s17, 1
      %s237 = smul.addr %s236, 12
      %s238 = smul.addr %s237, 8
      %s239 = scalar_lea.vmem %s3, %s238
      %p240 = scmp.lt.s32.totalorder %s17, 1
      %s241 = scalar_select %p240, %s17, 1
      %s242 = smul.addr %s241, 4
      %s243 = smul.addr %s242, 8
      %s244 = scalar_lea.vmem %s4, %s243
      %p245 = scmp.lt.s32.totalorder %s17, 1
      %s246 = scalar_select %p245, %s17, 1
      %s247 = smul.addr %s246, 4
      %s248 = smul.addr %s247, 8
      %s249 = scalar_lea.vmem %s5, %s248
      %v250 = vld [vmem:[%s234] sm:$0xff]
      %v251 = vld [vmem:[%s234 + $0x8] sm:$0xf]
      %v253 = vcombine.high %v250, %v250
      %255 = vst [vmem:[#allocation2] sm:$0xf] %v250
      %256 = vst [vmem:[#allocation2 + $0x8] sm:$0xf] %v253
      %257 = vst [vmem:[#allocation2 + $0x10] sm:$0xf] %v251
      %v258 = vld [vmem:[%s234] sm:$0xff]
      %v259 = vld [vmem:[%s234 + $0x8] sm:$0xff]
      %v262 = vcombine.low %v258, %v258
      %v263 = vcombine.low %v259, %v259
      %264 = vrot.lane.b32.xlu0 %v262, 127
      %v265 = vpop.permute.xlu0 %264
      %266 = vrot.lane.b32.xlu0 %v258, 127
      %v267 = vpop.permute.xlu0 %266
      %268 = vrot.lane.b32.xlu0 %v263, 127
      %v269 = vpop.permute.xlu0 %268
      %270 = vrot.lane.b32.xlu0 %v259, 127
      %v271 = vpop.permute.xlu0 %270
      %vm272 = vcmask 1039360
      %v273 = vsel %vm272, %v265, %v267
      %v274 = vsel %vm272, %v267, %v269
      %v275 = vsel %vm272, %v269, %v271
      %279 = vst [vmem:[#allocation2] sm:$0xf0] %v273
      %280 = vst [vmem:[#allocation2 + $0x8] sm:$0xf0] %v274
      %281 = vst [vmem:[#allocation2 + $0x10] sm:$0xf0] %v275
      %v282 = vld [vmem:[%s234] sm:$0xff]
      %v283 = vld [vmem:[%s234 + $0x8] sm:$0xff]
      %v286 = vcombine.high %v282, %v282
      %v287 = vcombine.high %v283, %v283
      %288 = vrot.lane.b32.xlu0 %v282, 126
      %v289 = vpop.permute.xlu0 %288
      %290 = vrot.lane.b32.xlu0 %v286, 126
      %v291 = vpop.permute.xlu0 %290
      %292 = vrot.lane.b32.xlu0 %v283, 126
      %v293 = vpop.permute.xlu0 %292
      %294 = vrot.lane.b32.xlu0 %v287, 126
      %v295 = vpop.permute.xlu0 %294
      %vm296 = vcmask 1031168
      %v297 = vsel %vm296, %v289, %v291
      %v298 = vsel %vm296, %v291, %v293
      %v299 = vsel %vm296, %v293, %v295
      %303 = vst [vmem:[#allocation2 + $0x18] sm:$0xf] %v297
      %304 = vst [vmem:[#allocation2 + $0x20] sm:$0xf] %v298
      %305 = vst [vmem:[#allocation2 + $0x28] sm:$0xf] %v299
      %v306 = vld [vmem:[%s234] sm:$0xff]
      %v307 = vld [vmem:[%s234 + $0x8] sm:$0xff]
      %v310 = vcombine.low %v306, %v306
      %v311 = vcombine.low %v307, %v307
      %312 = vrot.lane.b32.xlu0 %v310, 110
      %v313 = vpop.permute.xlu0 %312
      %314 = vrot.lane.b32.xlu0 %v306, 110
      %v315 = vpop.permute.xlu0 %314
      %316 = vrot.lane.b32.xlu0 %v311, 110
      %v317 = vpop.permute.xlu0 %316
      %318 = vrot.lane.b32.xlu0 %v307, 110
      %v319 = vpop.permute.xlu0 %318
      %vm320 = vcmask 900096
      %v321 = vsel %vm320, %v313, %v315
      %v322 = vsel %vm320, %v315, %v317
      %v323 = vsel %vm320, %v317, %v319
      %327 = vst [vmem:[#allocation2 + $0x18] sm:$0xf0] %v321
      %328 = vst [vmem:[#allocation2 + $0x20] sm:$0xf0] %v322
      %329 = vst [vmem:[#allocation2 + $0x28] sm:$0xf0] %v323
      %v330 = vld [vmem:[%s234] sm:$0xff]
      %v331 = vld [vmem:[%s234 + $0x8] sm:$0xff]
      %v334 = vcombine.high %v330, %v330
      %v335 = vcombine.high %v331, %v331
      %336 = vrot.lane.b32.xlu0 %v330, 109
      %v337 = vpop.permute.xlu0 %336
      %338 = vrot.lane.b32.xlu0 %v334, 109
      %v339 = vpop.permute.xlu0 %338
      %340 = vrot.lane.b32.xlu0 %v331, 109
      %v341 = vpop.permute.xlu0 %340
      %342 = vrot.lane.b32.xlu0 %v335, 109
      %v343 = vpop.permute.xlu0 %342
      %vm344 = vcmask 891904
      %v345 = vsel %vm344, %v337, %v339
      %v346 = vsel %vm344, %v339, %v341
      %v347 = vsel %vm344, %v341, %v343
      %351 = vst [vmem:[#allocation2 + $0x30] sm:$0xf] %v345
      %352 = vst [vmem:[#allocation2 + $0x38] sm:$0xf] %v346
      %353 = vst [vmem:[#allocation2 + $0x40] sm:$0xf] %v347
      %v354 = vld [vmem:[%s234] sm:$0xff]
      %v355 = vld [vmem:[%s234 + $0x8] sm:$0xff]
      %v358 = vcombine.low %v354, %v354
      %v359 = vcombine.low %v355, %v355
      %360 = vrot.lane.b32.xlu0 %v358, 108
      %v361 = vpop.permute.xlu0 %360
      %362 = vrot.lane.b32.xlu0 %v354, 108
      %v363 = vpop.permute.xlu0 %362
      %364 = vrot.lane.b32.xlu0 %v359, 108
      %v365 = vpop.permute.xlu0 %364
      %366 = vrot.lane.b32.xlu0 %v355, 108
      %v367 = vpop.permute.xlu0 %366
      %vm368 = vcmask 883712
      %v369 = vsel %vm368, %v361, %v363
      %v370 = vsel %vm368, %v363, %v365
      %v371 = vsel %vm368, %v365, %v367
      %375 = vst [vmem:[#allocation2 + $0x30] sm:$0xf0] %v369
      %376 = vst [vmem:[#allocation2 + $0x38] sm:$0xf0] %v370
      %377 = vst [vmem:[#allocation2 + $0x40] sm:$0xf0] %v371
      %v378 = vld [vmem:[%s234] sm:$0xff]
      %v379 = vld [vmem:[%s234 + $0x8] sm:$0xff]
      %v382 = vcombine.high %v378, %v378
      %v383 = vcombine.high %v379, %v379
      %384 = vrot.lane.b32.xlu0 %v378, 92
      %v385 = vpop.permute.xlu0 %384
      %386 = vrot.lane.b32.xlu0 %v382, 92
      %v387 = vpop.permute.xlu0 %386
      %388 = vrot.lane.b32.xlu0 %v379, 92
      %v389 = vpop.permute.xlu0 %388
      %390 = vrot.lane.b32.xlu0 %v383, 92
      %v391 = vpop.permute.xlu0 %390
      %vm392 = vcmask 752640
      %v393 = vsel %vm392, %v385, %v387
      %v394 = vsel %vm392, %v387, %v389
      %v395 = vsel %vm392, %v389, %v391
      %399 = vst [vmem:[#allocation2 + $0x48] sm:$0xf] %v393
      %400 = vst [vmem:[#allocation2 + $0x50] sm:$0xf] %v394
      %401 = vst [vmem:[#allocation2 + $0x58] sm:$0xf] %v395
      %v402 = vld [vmem:[%s234] sm:$0xff]
      %v403 = vld [vmem:[%s234 + $0x8] sm:$0xff]
      %v406 = vcombine.low %v402, %v402
      %v407 = vcombine.low %v403, %v403
      %408 = vrot.lane.b32.xlu0 %v406, 91
      %v409 = vpop.permute.xlu0 %408
      %410 = vrot.lane.b32.xlu0 %v402, 91
      %v411 = vpop.permute.xlu0 %410
      %412 = vrot.lane.b32.xlu0 %v407, 91
      %v413 = vpop.permute.xlu0 %412
      %414 = vrot.lane.b32.xlu0 %v403, 91
      %v415 = vpop.permute.xlu0 %414
      %vm416 = vcmask 744448
      %v417 = vsel %vm416, %v409, %v411
      %v418 = vsel %vm416, %v411, %v413
      %v419 = vsel %vm416, %v413, %v415
      %423 = vst [vmem:[#allocation2 + $0x48] sm:$0xf0] %v417
      %424 = vst [vmem:[#allocation2 + $0x50] sm:$0xf0] %v418
      %425 = vst [vmem:[#allocation2 + $0x58] sm:$0xf0] %v419
      %v426 = vld [vmem:[%s234] sm:$0xff]
      %v427 = vld [vmem:[%s234 + $0x8] sm:$0xff]
      %v430 = vcombine.high %v426, %v426
      %v431 = vcombine.high %v427, %v427
      %432 = vrot.lane.b32.xlu0 %v426, 90
      %v433 = vpop.permute.xlu0 %432
      %434 = vrot.lane.b32.xlu0 %v430, 90
      %v435 = vpop.permute.xlu0 %434
      %436 = vrot.lane.b32.xlu0 %v427, 90
      %v437 = vpop.permute.xlu0 %436
      %438 = vrot.lane.b32.xlu0 %v431, 90
      %v439 = vpop.permute.xlu0 %438
      %vm440 = vcmask 736256
      %v441 = vsel %vm440, %v433, %v435
      %v442 = vsel %vm440, %v435, %v437
      %v443 = vsel %vm440, %v437, %v439
      %447 = vst [vmem:[#allocation2 + $0x60] sm:$0xf] %v441
      %448 = vst [vmem:[#allocation2 + $0x68] sm:$0xf] %v442
      %449 = vst [vmem:[#allocation2 + $0x70] sm:$0xf] %v443
      %v450 = vld [vmem:[%s1] sm:$0xff]
      %v451 = vld [vmem:[%s1 + $0x8] sm:$0xff]
      %v452 = vld [vmem:[%s1 + $0x10] sm:$0xff]
      %v453 = vld [vmem:[%s1 + $0x18] sm:$0xff]
      %v454 = vld [vmem:[#allocation2] sm:$0xff]
      %v455 = vld [vmem:[#allocation2 + $0x8] sm:$0xff]
      %v456 = vld [vmem:[#allocation2 + $0x10] sm:$0xff]
      %v457 = vld [vmem:[#allocation2 + $0x18] sm:$0xff]
      %v458 = vld [vmem:[#allocation2 + $0x20] sm:$0xff]
      %v459 = vld [vmem:[#allocation2 + $0x28] sm:$0xff]
      %v460 = vld [vmem:[#allocation2 + $0x30] sm:$0xff]
      %v461 = vld [vmem:[#allocation2 + $0x38] sm:$0xff]
      %v462 = vld [vmem:[#allocation2 + $0x40] sm:$0xff]
      %v463 = vld [vmem:[#allocation2 + $0x48] sm:$0xff]
      %v464 = vld [vmem:[#allocation2 + $0x50] sm:$0xff]
      %v465 = vld [vmem:[#allocation2 + $0x58] sm:$0xff]
      %v466 = vld [vmem:[#allocation2 + $0x60] sm:$0xf]
      %v467 = vld [vmem:[#allocation2 + $0x68] sm:$0xf]
      %v468 = vld [vmem:[#allocation2 + $0x70] sm:$0xf]
      %vm469 = vcmask 293888
      %v471 = vsel %vm469, %v450, 0
      %v474 = vsel %vm469, %v451, 0
      %v477 = vsel %vm469, %v452, 0
      %v480 = vsel %vm469, %v453, 0
      %vm482 = vcmask 1043456
      %v484 = vsel %vm482, %v466, 0
      %v487 = vsel %vm482, %v467, 0
      %v490 = vsel %vm482, %v468, 0
      %492 = vmatprep.subr.mxu0 0.0
      %493 = vmatpush1.msra.mxu0 0.0
      %494 = vmatprep.subr.mxu0 0.0
      %495 = vmatpush1.msra.mxu0 0.0
      %496 = vmatprep.subr.mxu0 0.0
      %497 = vmatpush1.msra.mxu0 0.0
      %498 = vmatprep.subr.mxu0 0.0
      %499 = vmatpush1.msra.mxu0 0.0
      %500 = vmatprep.subr.mxu0 0.0
      %501 = vmatpush1.msra.mxu0 0.0
      %502 = vmatprep.subr.mxu0 0.0
      %503 = vmatpush1.msra.mxu0 0.0
      %504 = vmatprep.subr.mxu0 0.0
      %505 = vmatpush1.msra.mxu0 0.0
      %506 = vmatprep.subr.mxu0 0.0
      %507 = vmatpush1.msra.mxu0 0.0
      %508 = vmatprep.subr.mxu0 0.0
      %509 = vmatpush1.msra.mxu0 0.0
      %510 = vmatprep.subr.mxu0 0.0
      %511 = vmatpush1.msra.mxu0 0.0
      %512 = vmatprep.subr.mxu0 0.0
      %513 = vmatpush1.msra.mxu0 0.0
      %514 = vmatprep.subr.mxu0 %v487
      %515 = vmatpush1.msra.mxu0 %v484
      %516 = vmatprep.subr.mxu0 %v464
      %517 = vmatpush1.msra.mxu0 %v463
      %518 = vmatprep.subr.mxu0 %v461
      %519 = vmatpush1.msra.mxu0 %v460
      %520 = vmatprep.subr.mxu0 %v458
      %521 = vmatpush1.msra.mxu0 %v457
      %522 = vmatprep.subr.mxu0 %v455
      %523 = vmatpush1.msra.mxu0 %v454
      %524 = vmatprep.subr.mxu0 0.0
      %525 = vmatpush2.msra.mxu0 0.0
      %526 = vmatprep.subr.mxu0 0.0
      %527 = vmatpush2.msra.mxu0 0.0
      %528 = vmatprep.subr.mxu0 0.0
      %529 = vmatpush2.msra.mxu0 0.0
      %530 = vmatprep.subr.mxu0 0.0
      %531 = vmatpush2.msra.mxu0 0.0
      %532 = vmatprep.subr.mxu0 0.0
      %533 = vmatpush2.msra.mxu0 0.0
      %534 = vmatprep.subr.mxu0 0.0
      %535 = vmatpush2.msra.mxu0 0.0
      %536 = vmatprep.subr.mxu0 0.0
      %537 = vmatpush2.msra.mxu0 0.0
      %538 = vmatprep.subr.mxu0 0.0
      %539 = vmatpush2.msra.mxu0 0.0
      %540 = vmatprep.subr.mxu0 0.0
      %541 = vmatpush2.msra.mxu0 0.0
      %542 = vmatprep.subr.mxu0 0.0
      %543 = vmatpush2.msra.mxu0 0.0
      %544 = vmatprep.subr.mxu0 0.0
      %545 = vmatpush2.msra.mxu0 0.0
      %546 = vmatprep.subr.mxu0 0.0
      %547 = vmatpush2.msra.mxu0 0.0
      %548 = vmatprep.subr.mxu0 0.0
      %549 = vmatpush2.msra.mxu0 0.0
      %550 = vmatprep.subr.mxu0 0.0
      %551 = vmatpush2.msra.mxu0 0.0
      %552 = vmatprep.subr.mxu0 0.0
      %553 = vmatpush2.msra.mxu0 0.0
      %554 = vmatprep.subr.mxu0 0.0
      %555 = vmatpush2.msra.mxu0 0.0
      %556 = vmatprep.mubr.f32.mxu0 0.0
      %557 = vmatmul.mubr.f32.gmra.mxu0 %v471
      %v558 = vpop.f32.mrf.mxu0
      %v559 = vadd.f32 0.0, %v558
      %v560 = vpop.f32.mrf.mxu0
      %v561 = vadd.f32 0.0, %v560
      %562 = vmatprep.mubr.f32.mxu0 0.0
      %563 = vmatmul.mubr.f32.gmra.mxu0 %v474
      %v564 = vpop.f32.mrf.mxu0
      %v565 = vadd.f32 0.0, %v564
      %v566 = vpop.f32.mrf.mxu0
      %v567 = vadd.f32 0.0, %v566
      %568 = vmatprep.mubr.f32.mxu0 0.0
      %569 = vmatmul.mubr.f32.gmra.mxu0 %v477
      %v570 = vpop.f32.mrf.mxu0
      %v571 = vadd.f32 0.0, %v570
      %v572 = vpop.f32.mrf.mxu0
      %v573 = vadd.f32 0.0, %v572
      %574 = vmatprep.mubr.f32.mxu0 0.0
      %575 = vmatmul.mubr.f32.gmra.mxu0 %v480
      %v576 = vpop.f32.mrf.mxu0
      %v577 = vadd.f32 0.0, %v576
      %v578 = vpop.f32.mrf.mxu0
      %v579 = vadd.f32 0.0, %v578
      %580 = vdwg.mxu0
      %581 = vmatprep.subr.mxu0 0.0
      %582 = vmatpush1.msra.mxu0 0.0
      %583 = vmatprep.subr.mxu0 0.0
      %584 = vmatpush1.msra.mxu0 0.0
      %585 = vmatprep.subr.mxu0 0.0
      %586 = vmatpush1.msra.mxu0 0.0
      %587 = vmatprep.subr.mxu0 0.0
      %588 = vmatpush1.msra.mxu0 0.0
      %589 = vmatprep.subr.mxu0 0.0
      %590 = vmatpush1.msra.mxu0 0.0
      %591 = vmatprep.subr.mxu0 0.0
      %592 = vmatpush1.msra.mxu0 0.0
      %593 = vmatprep.subr.mxu0 0.0
      %594 = vmatpush1.msra.mxu0 0.0
      %595 = vmatprep.subr.mxu0 0.0
      %596 = vmatpush1.msra.mxu0 0.0
      %597 = vmatprep.subr.mxu0 0.0
      %598 = vmatpush1.msra.mxu0 0.0
      %599 = vmatprep.subr.mxu0 0.0
      %600 = vmatpush1.msra.mxu0 0.0
      %601 = vmatprep.subr.mxu0 0.0
      %602 = vmatpush1.msra.mxu0 0.0
      %603 = vmatprep.subr.mxu0 0.0
      %604 = vmatpush1.msra.mxu0 %v490
      %605 = vmatprep.subr.mxu0 0.0
      %606 = vmatpush1.msra.mxu0 %v465
      %607 = vmatprep.subr.mxu0 0.0
      %608 = vmatpush1.msra.mxu0 %v462
      %609 = vmatprep.subr.mxu0 0.0
      %610 = vmatpush1.msra.mxu0 %v459
      %611 = vmatprep.subr.mxu0 0.0
      %612 = vmatpush1.msra.mxu0 %v456
      %613 = vmatprep.subr.mxu0 0.0
      %614 = vmatpush2.msra.mxu0 0.0
      %615 = vmatprep.subr.mxu0 0.0
      %616 = vmatpush2.msra.mxu0 0.0
      %617 = vmatprep.subr.mxu0 0.0
      %618 = vmatpush2.msra.mxu0 0.0
      %619 = vmatprep.subr.mxu0 0.0
      %620 = vmatpush2.msra.mxu0 0.0
      %621 = vmatprep.subr.mxu0 0.0
      %622 = vmatpush2.msra.mxu0 0.0
      %623 = vmatprep.subr.mxu0 0.0
      %624 = vmatpush2.msra.mxu0 0.0
      %625 = vmatprep.subr.mxu0 0.0
      %626 = vmatpush2.msra.mxu0 0.0
      %627 = vmatprep.subr.mxu0 0.0
      %628 = vmatpush2.msra.mxu0 0.0
      %629 = vmatprep.subr.mxu0 0.0
      %630 = vmatpush2.msra.mxu0 0.0
      %631 = vmatprep.subr.mxu0 0.0
      %632 = vmatpush2.msra.mxu0 0.0
      %633 = vmatprep.subr.mxu0 0.0
      %634 = vmatpush2.msra.mxu0 0.0
      %635 = vmatprep.subr.mxu0 0.0
      %636 = vmatpush2.msra.mxu0 0.0
      %637 = vmatprep.subr.mxu0 0.0
      %638 = vmatpush2.msra.mxu0 0.0
      %639 = vmatprep.subr.mxu0 0.0
      %640 = vmatpush2.msra.mxu0 0.0
      %641 = vmatprep.subr.mxu0 0.0
      %642 = vmatpush2.msra.mxu0 0.0
      %643 = vmatprep.subr.mxu0 0.0
      %644 = vmatpush2.msra.mxu0 0.0
      %645 = vmatprep.mubr.f32.mxu0 0.0
      %646 = vmatmul.mubr.f32.gmra.mxu0 %v471
      %v647 = vpop.f32.mrf.mxu0
      %v648 = vadd.f32 0.0, %v647
      %v649 = vpop.f32.mrf.mxu0
      %650 = vmatprep.mubr.f32.mxu0 0.0
      %651 = vmatmul.mubr.f32.gmra.mxu0 %v474
      %v652 = vpop.f32.mrf.mxu0
      %v653 = vadd.f32 0.0, %v652
      %v654 = vpop.f32.mrf.mxu0
      %655 = vmatprep.mubr.f32.mxu0 0.0
      %656 = vmatmul.mubr.f32.gmra.mxu0 %v477
      %v657 = vpop.f32.mrf.mxu0
      %v658 = vadd.f32 0.0, %v657
      %v659 = vpop.f32.mrf.mxu0
      %660 = vmatprep.mubr.f32.mxu0 0.0
      %661 = vmatmul.mubr.f32.gmra.mxu0 %v480
      %v662 = vpop.f32.mrf.mxu0
      %v663 = vadd.f32 0.0, %v662
      %v664 = vpop.f32.mrf.mxu0
      %665 = vdwg.mxu0
      %666 = vst [vmem:[%s239] sm:$0xff] %v559
      %667 = vst [vmem:[%s239 + $0x8] sm:$0xff] %v561
      %668 = vst [vmem:[%s239 + $0x10] sm:$0xff] %v648
      %669 = vst [vmem:[%s239 + $0x18] sm:$0xff] %v565
      %670 = vst [vmem:[%s239 + $0x20] sm:$0xff] %v567
      %671 = vst [vmem:[%s239 + $0x28] sm:$0xff] %v653
      %672 = vst [vmem:[%s239 + $0x30] sm:$0xff] %v571
      %673 = vst [vmem:[%s239 + $0x38] sm:$0xff] %v573
      %674 = vst [vmem:[%s239 + $0x40] sm:$0xff] %v658
      %675 = vst [vmem:[%s239 + $0x48] sm:$0xff] %v577
      %676 = vst [vmem:[%s239 + $0x50] sm:$0xff] %v579
      %677 = vst [vmem:[%s239 + $0x58] sm:$0xff] %v663
      %v678 = vld [vmem:[%s2] sm:$0x7]
      %v680 = vlaneseq
      %v681 = vshrl.u32 %v680, 7
      %v682 = vsub.s32 0, %v681
      %v683 = vrot.slane %v678, %v682
      %v684 = vlaneseq
      %v685 = vshrl.u32 %v684, 7
      %v686 = vsub.s32 1, %v685
      %v687 = vrot.slane %v678, %v686
      %v688 = vlaneseq
      %v689 = vshrl.u32 %v688, 7
      %v690 = vsub.s32 2, %v689
      %v691 = vrot.slane %v678, %v690
      %v695 = vmul.f32 %v559, %v683
      %v696 = vmul.f32 %v561, %v687
      %v697 = vmul.f32 %v648, %v691
      %v698 = vmul.f32 %v565, %v683
      %v699 = vmul.f32 %v567, %v687
      %v700 = vmul.f32 %v653, %v691
      %v701 = vmul.f32 %v571, %v683
      %v702 = vmul.f32 %v573, %v687
      %v703 = vmul.f32 %v658, %v691
      %v704 = vmul.f32 %v577, %v683
      %v705 = vmul.f32 %v579, %v687
      %v706 = vmul.f32 %v663, %v691
      %v707 = vadd.f32 %v695, %v696
      %v708 = vadd.f32 %v707, %v697
      %709 = vadd.xlane.f32.xlu0 %v708
      %v710 = vpop.xlane.xlu0 %709
      %v711 = vadd.f32 %v698, %v699
      %v712 = vadd.f32 %v711, %v700
      %713 = vadd.xlane.f32.xlu0 %v712
      %v714 = vpop.xlane.xlu0 %713
      %v715 = vadd.f32 %v701, %v702
      %v716 = vadd.f32 %v715, %v703
      %717 = vadd.xlane.f32.xlu0 %v716
      %v718 = vpop.xlane.xlu0 %717
      %v719 = vadd.f32 %v704, %v705
      %v720 = vadd.f32 %v719, %v706
      %721 = vadd.xlane.f32.xlu0 %v720
      %v722 = vpop.xlane.xlu0 %721
      %vm723 = vcmask 7168
      %724 = vst.msk [vmem:[%s244] sm:$0xff] %vm723, %v710
      %725 = vst.msk [vmem:[%s244 + $0x8] sm:$0xff] %vm723, %v714
      %726 = vst.msk [vmem:[%s244 + $0x10] sm:$0xff] %vm723, %v718
      %727 = vst.msk [vmem:[%s244 + $0x18] sm:$0xff] %vm723, %v722
      %v728 = vmul.f32 %v695, %v559
      %v729 = vmul.f32 %v696, %v561
      %v730 = vmul.f32 %v697, %v648
      %v731 = vmul.f32 %v698, %v565
      %v732 = vmul.f32 %v699, %v567
      %v733 = vmul.f32 %v700, %v653
      %v734 = vmul.f32 %v701, %v571
      %v735 = vmul.f32 %v702, %v573
      %v736 = vmul.f32 %v703, %v658
      %v737 = vmul.f32 %v704, %v577
      %v738 = vmul.f32 %v705, %v579
      %v739 = vmul.f32 %v706, %v663
      %v740 = vadd.f32 %v728, %v729
      %v741 = vadd.f32 %v740, %v730
      %742 = vadd.xlane.f32.xlu0 %v741
      %v743 = vpop.xlane.xlu0 %742
      %v744 = vadd.f32 %v731, %v732
      %v745 = vadd.f32 %v744, %v733
      %746 = vadd.xlane.f32.xlu0 %v745
      %v747 = vpop.xlane.xlu0 %746
      %v748 = vadd.f32 %v734, %v735
      %v749 = vadd.f32 %v748, %v736
      %750 = vadd.xlane.f32.xlu0 %v749
      %v751 = vpop.xlane.xlu0 %750
      %v752 = vadd.f32 %v737, %v738
      %v753 = vadd.f32 %v752, %v739
      %754 = vadd.xlane.f32.xlu0 %v753
      %v755 = vpop.xlane.xlu0 %754
      %756 = vst.msk [vmem:[%s249] sm:$0xff] %vm723, %v743
      %757 = vst.msk [vmem:[%s249 + $0x8] sm:$0xff] %vm723, %v747
      %758 = vst.msk [vmem:[%s249 + $0x10] sm:$0xff] %vm723, %v751
      %759 = vst.msk [vmem:[%s249 + $0x18] sm:$0xff] %vm723, %v755
      %p760 = scmp.lt.s32.totalorder %s17, 1
      %s761 = scalar_select %p760, %s17, 1
      %s762 = smul.addr %s761, 12
      %s763 = smul.addr %s762, 8
      %s764 = scalar_lea.vmem %s3, %s763
      %p765 = scmp.lt.s32.totalorder %s17, 1
      %s766 = scalar_select %p765, %s17, 1
      %s767 = smul.addr %s766, 4
      %s768 = smul.addr %s767, 8
      %s769 = scalar_lea.vmem %s4, %s768
      %p770 = scmp.lt.s32.totalorder %s17, 1
      %s771 = scalar_select %p770, %s17, 1
      %s772 = smul.addr %s771, 4
      %s773 = smul.addr %s772, 8
      %s774 = scalar_lea.vmem %s5, %s773
      // Predicated region
      $region33: #{upconv_block_forward.1} parent=31 // pred_check
        %p775 = pneg %p103
      $region34: #{upconv_block_forward.1} parent=31 // pred_check_branch
        %777 = sbr.rel (%p775) target = $region36
      $region35: #{upconv_block_forward.1} parent=31 // pred_region
        _
      $region36: #{upconv_block_forward.1} parent=31 // pred_fallthru
        _
      // Predicated region
      $region37: #{upconv_block_forward.1} parent=31 // pred_check
        %p778 = pneg %p129
      $region38: #{upconv_block_forward.1} parent=31 // pred_check_branch
        %780 = sbr.rel (%p778) target = $region40
      $region39: #{upconv_block_forward.1} parent=31 // pred_region
        _
      $region40: #{upconv_block_forward.1} parent=31 // pred_fallthru
        _
      // Predicated region
      $region41: #{upconv_block_forward.1} parent=31 // pred_check
        %p781 = pneg %p155
      $region42: #{upconv_block_forward.1} parent=31 // pred_check_branch
        %783 = sbr.rel (%p781) target = $region44
      $region43: #{upconv_block_forward.1} parent=31 // pred_region
        _
      $region44: #{upconv_block_forward.1} parent=31 // pred_fallthru
        _
    $region32: #{upconv_block_forward.1} parent=5 // pred_fallthru
      _
    %p784 = scmp.le.s32.totalorder 2, %s12
    // Predicated region
    $region45: #{upconv_block_forward.1} parent=5 // pred_check
      %p785 = pneg %p784
    $region46: #{upconv_block_forward.1} parent=5 // pred_check_branch
      %787 = sbr.rel (%p785) target = $region48
    $region47: #{upconv_block_forward.1} parent=5 // pred_region
      %s788 = ssub.s32 %s12, 2
      // Predicated region
      $region49: #{upconv_block_forward.1} parent=47 // pred_check
        %p789 = pneg %p109
      $region50: #{upconv_block_forward.1} parent=47 // pred_check_branch
        %791 = sbr.rel (%p789) target = $region52
      $region51: #{upconv_block_forward.1} parent=47 // pred_region
        %p792 = scmp.lt.s32.totalorder %s18, 1
        %s793 = scalar_select %p792, %s18, 1
        %s794 = smul.addr %s793, 12
        %s795 = smul.addr %s794, 8
        %s796 = scalar_lea.vmem %s3, %s795
      $region52: #{upconv_block_forward.1} parent=47 // pred_fallthru
        _
      // Predicated region
      $region53: #{upconv_block_forward.1} parent=47 // pred_check
        %p797 = pneg %p135
      $region54: #{upconv_block_forward.1} parent=47 // pred_check_branch
        %799 = sbr.rel (%p797) target = $region56
      $region55: #{upconv_block_forward.1} parent=47 // pred_region
        %p800 = scmp.lt.s32.totalorder %s18, 1
        %s801 = scalar_select %p800, %s18, 1
        %s802 = smul.addr %s801, 4
        %s803 = smul.addr %s802, 8
        %s804 = scalar_lea.vmem %s4, %s803
      $region56: #{upconv_block_forward.1} parent=47 // pred_fallthru
        _
      // Predicated region
      $region57: #{upconv_block_forward.1} parent=47 // pred_check
        %p805 = pneg %p161
      $region58: #{upconv_block_forward.1} parent=47 // pred_check_branch
        %807 = sbr.rel (%p805) target = $region60
      $region59: #{upconv_block_forward.1} parent=47 // pred_region
        %p808 = scmp.lt.s32.totalorder %s18, 1
        %s809 = scalar_select %p808, %s18, 1
        %s810 = smul.addr %s809, 4
        %s811 = smul.addr %s810, 8
        %s812 = scalar_lea.vmem %s5, %s811
      $region60: #{upconv_block_forward.1} parent=47 // pred_fallthru
        _
    $region48: #{upconv_block_forward.1} parent=5 // pred_fallthru
      _
  $region6: #{upconv_block_forward.1} parent=0 // loop_footer
    %s16 = sadd.s32 1, %s12
  $region7: #{upconv_block_forward.1} parent=0 // loop_footer_branch
    %11 = sbr.rel target = $region3
  $region8: #{upconv_block_forward.1} parent=0 // loop_exit
    _

</llo_original>
